<compile_context>
chip_gen: v7x
topology: tpu7x:2x2x1
jax: 0.10.0
libtpu: 0.0.40
codegen_flags: <defaults>
</compile_context>

<pallas_src>
import functools

import jax
import jax.numpy as jnp
from jax.experimental import pallas as pl
from jax.experimental.pallas import tpu as pltpu


def _round_up(x, m):
    return ((x + m - 1) // m) * m


def _tpu_info():
    """Best-effort (capacity_bytes, is_v7x).  Falls back to conservative values."""
    cap = None
    try:
        cap = int(pltpu.get_tpu_info().vmem_capacity_bytes)
    except Exception:
        cap = None
    kind = ""
    try:
        kind = jax.devices()[0].device_kind.lower()
    except Exception:
        kind = ""
    is_v7 = "v7" in kind
    if cap is None:
        # Conservative fallback: size as if on the smallest current part (v7x, 64 MiB).
        cap = 64 << 20
    return cap, is_v7


def _attention_kernel(enc_ref, dec_ref, we_ref, wd_ref, bc_ref, wf_ref, bf_ref,
                      awe_ref, alpha_ref, *, valid_p, p_out):
    bb, p_pad, e_dim = enc_ref.shape
    a_dim = we_ref.shape[1]

    enc = enc_ref[...]                                             # (BB, P, E)

    # encoder_att: one big (BB*P, E) x (E, A) MXU matmul, bf16 operands / f32 acc.
    att1 = jnp.dot(enc.reshape(bb * p_pad, e_dim).astype(jnp.bfloat16),
                   we_ref[...],
                   preferred_element_type=jnp.float32)
    att1 = att1.reshape(bb, p_pad, a_dim)                          # (BB, P, A)

    # decoder_att: (BB, D) x (D, A) MXU matmul; both linear biases folded in bc.
    att2 = jnp.dot(dec_ref[...].astype(jnp.bfloat16), wd_ref[...],
                   preferred_element_type=jnp.float32) + bc_ref[...]   # (BB, A)

    h = jnp.maximum(att1 + att2[:, None, :], 0.0)                  # (BB, P, A) f32

    # full_att (A -> 1): VPU multiply + lane reduce (keeps MXU free of 1-col matmuls).
    # TODO(synk): if profiling shows the XLU saturating on v6e/v7x for large A,
    # move this contraction onto the MXU as a (BB*P, A) x (A, 1) matmul.
    att = jnp.sum(h * wf_ref[...], axis=-1) + bf_ref[0, 0]         # (BB, P) lane-dense

    if valid_p != p_pad:
        # Exclude padded pixel rows from the softmax.
        pix = jax.lax.broadcasted_iota(jnp.int32, (bb, p_pad), 1)
        att = jnp.where(pix < valid_p, att, -jnp.inf)

    # Softmax over the pixel (lane) axis in f32; divide -> reciprocal + multiply.
    m = jnp.max(att, axis=-1, keepdims=True)
    ex = jnp.exp(att - m)
    s = jnp.sum(ex, axis=-1, keepdims=True)
    inv_s = pl.reciprocal(s, approx=True)                          # EUP slot, ~free
    alpha = ex * inv_s                                             # (BB, P)

    # Attention-weighted encoding: VPU reduce over pixels.  No explicit f32 copy
    # of the encoder tile -- the multiply promotes per-vreg, accumulates in f32.
    awe = jnp.sum(enc * alpha[:, :, None], axis=1)                 # (BB, E) f32
    awe_ref[...] = awe.astype(awe_ref.dtype)

    # Lane-dense alpha writeback: pad the pixel axis up to a multiple of 128 so
    # the store is an unmasked vst.  Padded columns are exact zeros.
    if p_out != p_pad:
        alpha = jnp.concatenate(
            [alpha, jnp.zeros((bb, p_out - p_pad), dtype=alpha.dtype)], axis=-1)
    alpha_ref[...] = alpha.astype(alpha_ref.dtype)


def soft_attention(encoder_out, decoder_hidden, params, *, batch_block=None):
    """encoder_out: (B, P, E); decoder_hidden: (B, D).
    params: we (E,A), be (1,A), wd (D,A), bd (1,A), wf (1,A), bf (1,1)."""
    B, P, E = encoder_out.shape
    D = decoder_hidden.shape[1]
    A = params["we"].shape[1]
    dtype = encoder_out.dtype
    enc_itemsize = jnp.dtype(dtype).itemsize

    # Pixel axis padded to a sublane multiple so the in-kernel (BB,P,E)<->(BB*P,E)
    # reshape is layout-free; alpha output padded further to a lane multiple so
    # its store is unmasked.
    P_pad = _round_up(P, 8)
    P_out = _round_up(P_pad, 128)

    # ---- generation-aware VMEM budget -------------------------------------
    vmem_capacity, is_v7x = _tpu_info()
    tile_budget = int(vmem_capacity * 0.45)

    w_itemsize = 2  # weights stored bf16, single-buffered (Buffered(1))
    fixed = (E * A + D * A) * w_itemsize
    fixed += 2 * 8 * _round_up(A, 128) * 4                 # bc / wf padded VMEM tiles
    per_b = (2 * P_pad * E * enc_itemsize                  # encoder tile (double-buffered)
             + P_pad * E * 2                               # bf16 copy for the MXU
             + 2 * D * 4                                   # decoder tile
             + 2 * E * 4                                   # awe output
             + 2 * P_out * 4                               # alpha output
             + 3 * P_pad * A * 4                           # att1 / h / slack temporaries
             + 2 * P_out * 4)                              # softmax temporaries
    bb_vmem = max(1, (tile_budget - fixed) // per_b)

    if batch_block is None:
        target_rows = 512                                  # feed the MXU long runs
        bb = max(1, -(-target_rows // P_pad))              # ceil(target / P_pad)
        bb = min(bb, bb_vmem)
    else:
        bb = max(1, batch_block)
    bb = min(bb, B)

    # v7x: keep >= 2 grid steps so the "parallel" axis spans both TensorCores.
    if is_v7x and batch_block is None and B >= 16:
        bb = min(bb, max(8, ((B // 2) // 8) * 8))

    if bb < B:
        if B <= 8:
            bb = B                        # single block; block shapes == full dims
        elif bb % 8 != 0:
            # Sublane-align the leading dim of the 2-D blocks.  Round *down* so the
            # alignment never silently exceeds the VMEM budget just computed.
            bb = max(8, (bb // 8) * 8)
    bb = min(bb, B)
    B_pad = _round_up(B, bb)

    required = fixed + bb * per_b + (2 << 20)              # + compiler scratch slack
    vmem_limit = max(32 << 20, int(required * 1.25))
    vmem_limit = min(vmem_limit, vmem_capacity - (8 << 20))

    enc = encoder_out
    dec = decoder_hidden
    if B_pad != B or P_pad != P:
        enc = jnp.pad(enc, ((0, B_pad - B), (0, P_pad - P), (0, 0)))
    if B_pad != B:
        dec = jnp.pad(dec, ((0, B_pad - B), (0, 0)))

    # Fold the two linear biases into one add; store the MXU weights as bf16
    # (halves their DMA/VMEM; accumulation stays f32 in-kernel).
    bc = (params["be"] + params["bd"]).astype(jnp.float32)
    we_bf = params["we"].astype(jnp.bfloat16)
    wd_bf = params["wd"].astype(jnp.bfloat16)
    wf = params["wf"].astype(jnp.float32)
    bf = params["bf"].astype(jnp.float32)

    kernel = functools.partial(_attention_kernel, valid_p=P, p_out=P_out)

    grid_spec = pltpu.PrefetchScalarGridSpec(
        num_scalar_prefetch=0,
        grid=(B_pad // bb,),
        in_specs=[
            pl.BlockSpec((bb, P_pad, E), lambda b: (b, 0, 0)),            # encoder_out
            pl.BlockSpec((bb, D), lambda b: (b, 0)),                      # decoder_hidden
            pl.BlockSpec((E, A), lambda b: (0, 0),
                         pipeline_mode=pl.Buffered(1)),                   # W_enc^T (resident)
            pl.BlockSpec((D, A), lambda b: (0, 0),
                         pipeline_mode=pl.Buffered(1)),                   # W_dec^T (resident)
            pl.BlockSpec((1, A), lambda b: (0, 0),
                         pipeline_mode=pl.Buffered(1)),                   # b_enc + b_dec
            pl.BlockSpec((1, A), lambda b: (0, 0),
                         pipeline_mode=pl.Buffered(1)),                   # W_full
            pl.BlockSpec(memory_space=pltpu.MemorySpace.SMEM),            # b_full (scalar)
        ],
        out_specs=[
            pl.BlockSpec((bb, E), lambda b: (b, 0)),                      # awe
            pl.BlockSpec((bb, P_out), lambda b: (b, 0)),                  # alpha (lane-dense)
        ],
    )

    awe, alpha = pl.pallas_call(
        kernel,
        out_shape=(jax.ShapeDtypeStruct((B_pad, E), dtype),
                   jax.ShapeDtypeStruct((B_pad, P_out), dtype)),
        grid_spec=grid_spec,
        compiler_params=pltpu.CompilerParams(
            dimension_semantics=("parallel",),       # shards across v7x's 2 TCs
            vmem_limit_bytes=int(vmem_limit)),
    )(enc, dec, we_bf, wd_bf, bc, wf, bf)

    return awe[:B], alpha[:B, :P]


def init_params(key, encoder_dim, decoder_dim, attention_dim, dtype=jnp.float32):
    """Deterministic synthetic parameters (shapes match nn.Linear in the module)."""
    k1, k2, k3, k4, k5, k6 = jax.random.split(key, 6)
    # Stored transposed relative to torch's (out, in) convention.
    we = jax.random.normal(k1, (encoder_dim, attention_dim), dtype) * 0.1
    be = jax.random.normal(k2, (1, attention_dim), dtype) * 0.1
    wd = jax.random.normal(k3, (decoder_dim, attention_dim), dtype) * 0.1
    bd = jax.random.normal(k4, (1, attention_dim), dtype) * 0.1
    wf = jax.random.normal(k5, (1, attention_dim), dtype) * 0.1
    bf = jax.random.normal(k6, (1, 1), dtype) * 0.1
    return dict(we=we, be=be, wd=wd, bd=bd, wf=wf, bf=bf)


def soft_attention_ref(encoder_out, decoder_hidden, p):
    """Pure-JAX reference mirroring the PyTorch forward exactly (f32 throughout)."""
    att1 = encoder_out @ p["we"] + p["be"]                       # (B, P, A)
    att2 = decoder_hidden @ p["wd"] + p["bd"]                    # (B, A)
    att = jnp.maximum(att1 + att2[:, None, :], 0.0)
    att = jnp.sum(att * p["wf"], axis=-1) + p["bf"][0, 0]        # (B, P)
    alpha = jax.nn.softmax(att, axis=1)
    awe = jnp.sum(encoder_out * alpha[:, :, None], axis=1)       # (B, E)
    return awe, alpha


if __name__ == "__main__":
    # batch, num_pixels, encoder_dim, decoder_dim, attention_dim
    B, P, E, D, A = 2, 16, 32, 32, 32

    key = jax.random.PRNGKey(0)
    k_enc, k_dec, k_par = jax.random.split(key, 3)
    encoder_out = jax.random.normal(k_enc, (B, P, E), jnp.float32)
    decoder_hidden = jax.random.normal(k_dec, (B, D), jnp.float32)
    params = init_params(k_par, E, D, A)

    awe, alpha = soft_attention(encoder_out, decoder_hidden, params)
    jax.block_until_ready((awe, alpha))

    # bf16 MXU operands + approx reciprocal => tolerance loosened vs the f32 path.
    TOL = 2e-2
    awe_ref, alpha_ref = soft_attention_ref(encoder_out, decoder_hidden, params)
    assert jnp.allclose(awe, awe_ref, atol=TOL, rtol=TOL), "awe mismatch"
    assert jnp.allclose(alpha, alpha_ref, atol=TOL, rtol=TOL), "alpha mismatch"

    # Ragged shapes: exercises batch/pixel padding, the -inf softmax mask and the
    # lane-dense alpha staging.
    B2, P2, E2, D2, A2 = 3, 10, 32, 24, 48
    k1, k2, k3 = jax.random.split(jax.random.PRNGKey(1), 3)
    enc2 = jax.random.normal(k1, (B2, P2, E2), jnp.float32)
    dec2 = jax.random.normal(k2, (B2, D2), jnp.float32)
    par2 = init_params(k3, E2, D2, A2)
    awe2, alpha2 = soft_attention(enc2, dec2, par2)
    jax.block_until_ready((awe2, alpha2))
    awe2_ref, alpha2_ref = soft_attention_ref(enc2, dec2, par2)
    assert jnp.allclose(awe2, awe2_ref, atol=TOL, rtol=TOL), "awe mismatch (ragged)"
    assert jnp.allclose(alpha2, alpha2_ref, atol=TOL, rtol=TOL), "alpha mismatch (ragged)"

    print("KERNEL_OK")
</pallas_src>

<mosaic_0001>
module attributes {stable_mosaic.version = 11 : i64} {
  func.func @_attention_kernel(%arg0: i32, %arg1: memref<2x16x32xf32, #tpu.memory_space<vmem>>, %arg2: memref<2x32xf32, #tpu.memory_space<vmem>>, %arg3: memref<32x32xbf16, #tpu.memory_space<vmem>>, %arg4: memref<32x32xbf16, #tpu.memory_space<vmem>>, %arg5: memref<1x32xf32, #tpu.memory_space<vmem>>, %arg6: memref<1x32xf32, #tpu.memory_space<vmem>>, %arg7: memref<1x1xf32, #tpu.memory_space<smem>>, %arg8: memref<2x32xf32, #tpu.memory_space<vmem>>, %arg9: memref<2x128xf32, #tpu.memory_space<vmem>>) attributes {dimension_semantics = [#tpu.dimension_semantics<parallel>], iteration_bounds = array<i64: 1>, scalar_prefetch = 0 : i64, scratch_operands = 0 : i64, tpu.core_type = #tpu.core_type<tc>, window_params = [{transform_indices = @transform_0, window_bounds = array<i64: 2, 16, 32>}, {transform_indices = @transform_1, window_bounds = array<i64: 2, 32>}, {pipeline_mode = #tpu.pipeline_mode<synchronous>, transform_indices = @transform_2, window_bounds = array<i64: 32, 32>}, {pipeline_mode = #tpu.pipeline_mode<synchronous>, transform_indices = @transform_3, window_bounds = array<i64: 32, 32>}, {pipeline_mode = #tpu.pipeline_mode<synchronous>, transform_indices = @transform_4, window_bounds = array<i64: 1, 32>}, {pipeline_mode = #tpu.pipeline_mode<synchronous>, transform_indices = @transform_5, window_bounds = array<i64: 1, 32>}, {transform_indices = @transform_6, window_bounds = array<i64: 1, 1>}, {transform_indices = @transform_7, window_bounds = array<i64: 2, 32>}, {transform_indices = @transform_8, window_bounds = array<i64: 2, 128>}]} {
    %c0 = arith.constant 0 : index
    %c0_0 = arith.constant 0 : index
    %c0_1 = arith.constant 0 : index
    %0 = vector.load %arg1[%c0, %c0_0, %c0_1] : memref<2x16x32xf32, #tpu.memory_space<vmem>>, vector<2x16x32xf32>
    %1 = vector.shape_cast %0 : vector<2x16x32xf32> to vector<32x32xf32>
    %2 = arith.truncf %1 : vector<32x32xf32> to vector<32x32xbf16>
    %c0_2 = arith.constant 0 : index
    %c0_3 = arith.constant 0 : index
    %3 = vector.load %arg3[%c0_2, %c0_3] : memref<32x32xbf16, #tpu.memory_space<vmem>>, vector<32x32xbf16>
    %cst = arith.constant dense<0.000000e+00> : vector<32x32xf32>
    %4 = tpu.matmul %2, %3, %cst {dimension_numbers = #tpu.dot_dimension_numbers<[1], [0], [0], [1], [0, 0, 1, 1], [], []>} : vector<32x32xbf16>, vector<32x32xbf16>, vector<32x32xf32> -> vector<32x32xf32>
    %5 = vector.shape_cast %4 : vector<32x32xf32> to vector<2x16x32xf32>
    %c0_4 = arith.constant 0 : index
    %c0_5 = arith.constant 0 : index
    %6 = vector.load %arg2[%c0_4, %c0_5] : memref<2x32xf32, #tpu.memory_space<vmem>>, vector<2x32xf32>
    %7 = arith.truncf %6 : vector<2x32xf32> to vector<2x32xbf16>
    %c0_6 = arith.constant 0 : index
    %c0_7 = arith.constant 0 : index
    %8 = vector.load %arg4[%c0_6, %c0_7] : memref<32x32xbf16, #tpu.memory_space<vmem>>, vector<32x32xbf16>
    %cst_8 = arith.constant dense<0.000000e+00> : vector<2x32xf32>
    %9 = tpu.matmul %7, %8, %cst_8 {dimension_numbers = #tpu.dot_dimension_numbers<[1], [0], [0], [1], [0, 0, 1, 1], [], []>} : vector<2x32xbf16>, vector<32x32xbf16>, vector<2x32xf32> -> vector<2x32xf32>
    %c0_9 = arith.constant 0 : index
    %c0_10 = arith.constant 0 : index
    %10 = vector.load %arg5[%c0_9, %c0_10] : memref<1x32xf32, #tpu.memory_space<vmem>>, vector<1x32xf32>
    %11 = vector.broadcast %10 : vector<1x32xf32> to vector<2x32xf32>
    %12 = arith.addf %9, %11 : vector<2x32xf32>
    %13 = vector.shape_cast %12 : vector<2x32xf32> to vector<2x1x32xf32>
    %14 = vector.broadcast %13 : vector<2x1x32xf32> to vector<2x16x32xf32>
    %15 = arith.addf %5, %14 : vector<2x16x32xf32>
    %cst_11 = arith.constant 0.000000e+00 : f32
    %16 = vector.broadcast %cst_11 : f32 to vector<2x16x32xf32>
    %17 = arith.maximumf %15, %16 : vector<2x16x32xf32>
    %c0_12 = arith.constant 0 : index
    %c0_13 = arith.constant 0 : index
    %18 = vector.load %arg6[%c0_12, %c0_13] : memref<1x32xf32, #tpu.memory_space<vmem>>, vector<1x32xf32>
    %19 = vector.shape_cast %18 : vector<1x32xf32> to vector<1x1x32xf32>
    %20 = vector.broadcast %19 : vector<1x1x32xf32> to vector<2x16x32xf32>
    %21 = arith.mulf %17, %20 : vector<2x16x32xf32>
    %cst_14 = arith.constant dense<0.000000e+00> : vector<2x16xf32>
    %22 = vector.multi_reduction <add>, %21, %cst_14 [2] : vector<2x16x32xf32> to vector<2x16xf32>
    %c0_15 = arith.constant 0 : index
    %c0_16 = arith.constant 0 : index
    %23 = memref.load %arg7[%c0_15, %c0_16] : memref<1x1xf32, #tpu.memory_space<smem>>
    %24 = vector.broadcast %23 : f32 to vector<2x16xf32>
    %25 = arith.addf %22, %24 : vector<2x16xf32>
    %cst_17 = arith.constant dense<0xFF800000> : vector<2xf32>
    %26 = vector.multi_reduction <maximumf>, %25, %cst_17 [1] : vector<2x16xf32> to vector<2xf32>
    %27 = vector.shape_cast %26 : vector<2xf32> to vector<2x1xf32>
    %28 = vector.broadcast %27 : vector<2x1xf32> to vector<2x16xf32>
    %29 = arith.subf %25, %28 : vector<2x16xf32>
    %30 = math.exp %29 : vector<2x16xf32>
    %cst_18 = arith.constant dense<0.000000e+00> : vector<2xf32>
    %31 = vector.multi_reduction <add>, %30, %cst_18 [1] : vector<2x16xf32> to vector<2xf32>
    %32 = vector.shape_cast %31 : vector<2xf32> to vector<2x1xf32>
    %33 = tpu.reciprocal %32 {approx = true} : vector<2x1xf32> -> vector<2x1xf32>
    %34 = vector.broadcast %33 : vector<2x1xf32> to vector<2x16xf32>
    %35 = arith.mulf %30, %34 : vector<2x16xf32>
    %36 = vector.shape_cast %35 : vector<2x16xf32> to vector<2x16x1xf32>
    %37 = vector.broadcast %36 : vector<2x16x1xf32> to vector<2x16x32xf32>
    %38 = arith.mulf %0, %37 : vector<2x16x32xf32>
    %cst_19 = arith.constant dense<0.000000e+00> : vector<2x32xf32>
    %39 = vector.multi_reduction <add>, %38, %cst_19 [1] : vector<2x16x32xf32> to vector<2x32xf32>
    %c0_20 = arith.constant 0 : index
    %c0_21 = arith.constant 0 : index
    %40 = vector.load %arg8[%c0_20, %c0_21] : memref<2x32xf32, #tpu.memory_space<vmem>>, vector<2x32xf32>
    tpu.vector_store %arg8[%c0_20, %c0_21], %39 {strides = array<i32>} : memref<2x32xf32, #tpu.memory_space<vmem>>, vector<2x32xf32>,
    %cst_22 = arith.constant 0.000000e+00 : f32
    %41 = vector.broadcast %cst_22 : f32 to vector<2x112xf32>
    %42 = tpu.concatenate %35, %41 in 1 : vector<2x16xf32>, vector<2x112xf32> -> vector<2x128xf32>
    %c0_23 = arith.constant 0 : index
    %c0_24 = arith.constant 0 : index
    %43 = vector.load %arg9[%c0_23, %c0_24] : memref<2x128xf32, #tpu.memory_space<vmem>>, vector<2x128xf32>
    tpu.vector_store %arg9[%c0_23, %c0_24], %42 {strides = array<i32>} : memref<2x128xf32, #tpu.memory_space<vmem>>, vector<2x128xf32>,
    return
  }
  func.func @transform_0(%arg0: i32) -> (i32, i32, i32) {
    %c0_i32 = arith.constant 0 : i32
    %c0_i32_0 = arith.constant 0 : i32
    %c0_i32_1 = arith.constant 0 : i32
    return %arg0, %c0_i32, %c0_i32_0 : i32, i32, i32
  }
  func.func @transform_1(%arg0: i32) -> (i32, i32) {
    %c0_i32 = arith.constant 0 : i32
    %c0_i32_0 = arith.constant 0 : i32
    return %arg0, %c0_i32 : i32, i32
  }
  func.func @transform_2(%arg0: i32) -> (i32, i32) {
    %c0_i32 = arith.constant 0 : i32
    %c0_i32_0 = arith.constant 0 : i32
    %c0_i32_1 = arith.constant 0 : i32
    return %c0_i32, %c0_i32_0 : i32, i32
  }
  func.func @transform_3(%arg0: i32) -> (i32, i32) {
    %c0_i32 = arith.constant 0 : i32
    %c0_i32_0 = arith.constant 0 : i32
    %c0_i32_1 = arith.constant 0 : i32
    return %c0_i32, %c0_i32_0 : i32, i32
  }
  func.func @transform_4(%arg0: i32) -> (i32, i32) {
    %c0_i32 = arith.constant 0 : i32
    %c0_i32_0 = arith.constant 0 : i32
    %c0_i32_1 = arith.constant 0 : i32
    return %c0_i32, %c0_i32_0 : i32, i32
  }
  func.func @transform_5(%arg0: i32) -> (i32, i32) {
    %c0_i32 = arith.constant 0 : i32
    %c0_i32_0 = arith.constant 0 : i32
    %c0_i32_1 = arith.constant 0 : i32
    return %c0_i32, %c0_i32_0 : i32, i32
  }
  func.func @transform_6(%arg0: i32) -> (i32, i32) {
    %c0_i32 = arith.constant 0 : i32
    %c0_i32_0 = arith.constant 0 : i32
    %c0_i32_1 = arith.constant 0 : i32
    return %c0_i32, %c0_i32_0 : i32, i32
  }
  func.func @transform_7(%arg0: i32) -> (i32, i32) {
    %c0_i32 = arith.constant 0 : i32
    %c0_i32_0 = arith.constant 0 : i32
    return %arg0, %c0_i32 : i32, i32
  }
  func.func @transform_8(%arg0: i32) -> (i32, i32) {
    %c0_i32 = arith.constant 0 : i32
    %c0_i32_0 = arith.constant 0 : i32
    return %arg0, %c0_i32 : i32, i32
  }
}

</mosaic_0001>

<llo_original>
// kernel: tpu_custom_call.1
$region0: #{tpu_custom_call.1}
  #allocation0 [shape = 'u32[]', space=smem, size = 0x4, offset = 0x4, fixed_abs, tag = 'smem constant byte address 0x4 - core index']
  #allocation1 [shape = 'u32[144,128]{1,0:T(1,128)}', space=vmem, size = 0x12000, scoped, tag = 'internal scratch']
  #allocation2 [shape = 'f32[1,1]{1,0:T(1,128)S(6)}', space=smem, size = 0x200, scoped, tag = 'scoped memory for tpu_custom_call.1']
  %s0 = inlined_call_operand.hbm [shape: f32[2,16,32], index: 0, kind: input, shape index: {}]
  %s1 = inlined_call_operand.vmem [shape: f32[2,32], index: 1, kind: input, shape index: {}]
  %s2 = inlined_call_operand.hbm [shape: bf16[32,32], index: 2, kind: input, shape index: {}]
  %s3 = inlined_call_operand.hbm [shape: bf16[32,32], index: 3, kind: input, shape index: {}]
  %s4 = inlined_call_operand.vmem [shape: f32[1,32], index: 4, kind: input, shape index: {}]
  %s5 = inlined_call_operand.vmem [shape: f32[1,32], index: 5, kind: input, shape index: {}]
  %s6 = inlined_call_operand.<no memory space> [shape: f32[1,1], index: 6, kind: input, shape index: {}]
  %s7 = inlined_call_operand.hbm [shape: f32[2,32], index: 7, kind: output, shape index: {0}]
  %s8 = inlined_call_operand.hbm [shape: f32[2,128], index: 8, kind: output, shape index: {1}]
  %9 = xla_tuple %s7, %s8
  %s10 = sld [smem:[#allocation0]]
  $region58: #{tpu_custom_call.1} parent=0
    _
  %s12 = ssub.s32 1, %s10
  %s13 = scalar_select 0, %s12, %s10
  %14 = sst [smem:[#allocation2]] %s6
  $region1: #{tpu_custom_call.1} parent=0
    #allocation3 [shape = 'u8[16384]{0}', space=vmem, size = 0x4000, scoped, tag = 'input window, operand 0, single buffered']
    #allocation4 [shape = 's32[1]{0}', space=sflag, size = 0x4, scoped, tag = 'scoped memory for tpu_custom_call.1']
    #allocation5 [shape = 's32[1]{0}', space=sflag, size = 0x4, scoped, tag = 'scoped memory for tpu_custom_call.1']
    #allocation6 [shape = 'u8[8192]{0}', space=vmem, size = 0x2000, scoped, tag = 'input window, operand 2, single buffered']
    #allocation7 [shape = 's32[1]{0}', space=sflag, size = 0x4, scoped, tag = 'scoped memory for tpu_custom_call.1']
    #allocation8 [shape = 'u8[8192]{0}', space=vmem, size = 0x2000, scoped, tag = 'input window, operand 3, single buffered']
    #allocation9 [shape = 'u8[1024]{0}', space=vmem, size = 0x400, scoped, tag = 'output window, operand 0, single buffered']
    #allocation10 [shape = 'u8[1024]{0}', space=vmem, size = 0x400, scoped, tag = 'output window, operand 1, single buffered']
    #allocation11 [shape = 's32[1]{0}', space=sflag, size = 0x4, scoped, tag = 'scoped memory for tpu_custom_call.1']
    %15 = vsyncpa [#allocation4], 0
    %16 = vsyncpa [#allocation7], 0
    %17 = vsyncpa [#allocation5], 0
    %18 = vsyncpa [#allocation11], 0
    // Predicated region
    $region2: #{tpu_custom_call.1} parent=1 // pred_check
      _
    $region3: #{tpu_custom_call.1} parent=1 // pred_check_branch
      %20 = sbr.rel (0) target = $region5
    $region4: #{tpu_custom_call.1} parent=1 // pred_region
      %s22 = ssub.s32 512, 512
      %23 = vsyncadd [#allocation4], %s22
      %s24 = sshll.u32 [#allocation3], 4
      %s25 = int_to_ptr.vmem [resolvable:$true] %s24
      %30 = dma.hbm_to_vmem [thread:$0]  %s0, 512, %s25, [#allocation4], 128, 128, 8
    $region5: #{tpu_custom_call.1} parent=1 // pred_fallthru
      _
    // Predicated region
    $region6: #{tpu_custom_call.1} parent=1 // pred_check
      _
    $region7: #{tpu_custom_call.1} parent=1 // pred_check_branch
      %32 = sbr.rel (0) target = $region9
    $region8: #{tpu_custom_call.1} parent=1 // pred_region
      _
    $region9: #{tpu_custom_call.1} parent=1 // pred_fallthru
      _
    // Predicated region
    $region10: #{tpu_custom_call.1} parent=1 // pred_check
      _
    $region11: #{tpu_custom_call.1} parent=1 // pred_check_branch
      %34 = sbr.rel (0) target = $region13
    $region12: #{tpu_custom_call.1} parent=1 // pred_region
      %s36 = ssub.s32 256, 256
      %37 = vsyncadd [#allocation7], %s36
      %s38 = sshll.u32 [#allocation6], 4
      %s39 = int_to_ptr.vmem [resolvable:$true] %s38
      %44 = dma.hbm_to_vmem [thread:$0]  %s2, 256, %s39, [#allocation7], 64, 64, 4
    $region13: #{tpu_custom_call.1} parent=1 // pred_fallthru
      _
    // Predicated region
    $region14: #{tpu_custom_call.1} parent=1 // pred_check
      _
    $region15: #{tpu_custom_call.1} parent=1 // pred_check_branch
      %46 = sbr.rel (0) target = $region17
    $region16: #{tpu_custom_call.1} parent=1 // pred_region
      %s48 = ssub.s32 256, 256
      %49 = vsyncadd [#allocation7], %s48
      %s50 = sshll.u32 [#allocation8], 4
      %s51 = int_to_ptr.vmem [resolvable:$true] %s50
      %56 = dma.hbm_to_vmem [thread:$0]  %s3, 256, %s51, [#allocation7], 64, 64, 4
    $region17: #{tpu_custom_call.1} parent=1 // pred_fallthru
      _
    // Predicated region
    $region18: #{tpu_custom_call.1} parent=1 // pred_check
      _
    $region19: #{tpu_custom_call.1} parent=1 // pred_check_branch
      %58 = sbr.rel (0) target = $region21
    $region20: #{tpu_custom_call.1} parent=1 // pred_region
      _
    $region21: #{tpu_custom_call.1} parent=1 // pred_fallthru
      _
    // Predicated region
    $region22: #{tpu_custom_call.1} parent=1 // pred_check
      _
    $region23: #{tpu_custom_call.1} parent=1 // pred_check_branch
      %60 = sbr.rel (0) target = $region25
    $region24: #{tpu_custom_call.1} parent=1 // pred_region
      _
    $region25: #{tpu_custom_call.1} parent=1 // pred_fallthru
      _
    // Predicated region
    $region26: #{tpu_custom_call.1} parent=1 // pred_check
      _
    $region27: #{tpu_custom_call.1} parent=1 // pred_check_branch
      %62 = sbr.rel (0) target = $region29
    $region28: #{tpu_custom_call.1} parent=1 // pred_region
      _
    $region29: #{tpu_custom_call.1} parent=1 // pred_fallthru
      _
    // Predicated region
    $region30: #{tpu_custom_call.1} parent=1 // pred_check
      _
    $region31: #{tpu_custom_call.1} parent=1 // pred_check_branch
      %64 = sbr.rel (0) target = $region33
    $region32: #{tpu_custom_call.1} parent=1 // pred_region
      %65 = dma.done [#allocation4], 512
    $region33: #{tpu_custom_call.1} parent=1 // pred_fallthru
      _
    // Predicated region
    $region34: #{tpu_custom_call.1} parent=1 // pred_check
      _
    $region35: #{tpu_custom_call.1} parent=1 // pred_check_branch
      %67 = sbr.rel (0) target = $region37
    $region36: #{tpu_custom_call.1} parent=1 // pred_region
      %68 = dma.done [#allocation7], 256
    $region37: #{tpu_custom_call.1} parent=1 // pred_fallthru
      _
    // Predicated region
    $region38: #{tpu_custom_call.1} parent=1 // pred_check
      _
    $region39: #{tpu_custom_call.1} parent=1 // pred_check_branch
      %70 = sbr.rel (0) target = $region41
    $region40: #{tpu_custom_call.1} parent=1 // pred_region
      %71 = dma.done [#allocation7], 256
    $region41: #{tpu_custom_call.1} parent=1 // pred_fallthru
      _
    %v73 = vld [vmem:[#allocation3] sm:$0xff]
    %v74 = vld [vmem:[#allocation3 + $0x8] sm:$0xff]
    %v75 = vld [vmem:[#allocation3 + $0x10] sm:$0xff]
    %v76 = vld [vmem:[#allocation3 + $0x18] sm:$0xff]
    %v77 = vpack.c.bf16 %v74, %v73
    %v78 = vpack.c.bf16 %v76, %v75
    %v79 = vld [vmem:[#allocation6] sm:$0xf]
    %v80 = vld [vmem:[#allocation6 + $0x4] sm:$0xf]
    %v81 = vld [vmem:[#allocation6 + $0x8] sm:$0xf]
    %v82 = vld [vmem:[#allocation6 + $0xc] sm:$0xf]
    %v87 = vunpack.c.l.b16 %v79
    %v88 = vunpack.c.l.b16 %v80
    %v89 = vunpack.c.l.b16 %v81
    %v90 = vunpack.c.l.b16 %v82
    %v91 = vpack.c.b16 %v88, %v87
    %v92 = vpack.c.b16 %v90, %v89
    %vm95 = vcmask 261120
    %v97 = vsel %vm95, %v77, 0
    %v100 = vsel %vm95, %v78, 0
    %102 = vmatprep.subr.bf16.mxu0 0
    %103 = vmatpush1.bf16.msra.mxu0 %v91
    %104 = vmatprep.subr.bf16.mxu0 0
    %105 = vmatpush1.bf16.msra.mxu0 %v92
    %106 = vmatprep.subr.bf16.mxu0 0
    %107 = vmatpush1.bf16.msra.mxu0 0
    %108 = vmatprep.subr.bf16.mxu0 0
    %109 = vmatpush1.bf16.msra.mxu0 0
    %110 = vmatprep.subr.bf16.mxu0 0
    %111 = vmatpush1.bf16.msra.mxu0 0
    %112 = vmatprep.subr.bf16.mxu0 0
    %113 = vmatpush1.bf16.msra.mxu0 0
    %114 = vmatprep.subr.bf16.mxu0 0
    %115 = vmatpush1.bf16.msra.mxu0 0
    %116 = vmatprep.subr.bf16.mxu0 0
    %117 = vmatpush1.bf16.msra.mxu0 0
    %118 = vmatprep.subr.bf16.mxu0 0
    %119 = vmatpush1.bf16.msra.mxu0 0
    %120 = vmatprep.subr.bf16.mxu0 0
    %121 = vmatpush1.bf16.msra.mxu0 0
    %122 = vmatprep.subr.bf16.mxu0 0
    %123 = vmatpush1.bf16.msra.mxu0 0
    %124 = vmatprep.subr.bf16.mxu0 0
    %125 = vmatpush1.bf16.msra.mxu0 0
    %126 = vmatprep.subr.bf16.mxu0 0
    %127 = vmatpush1.bf16.msra.mxu0 0
    %128 = vmatprep.subr.bf16.mxu0 0
    %129 = vmatpush1.bf16.msra.mxu0 0
    %130 = vmatprep.subr.bf16.mxu0 0
    %131 = vmatpush1.bf16.msra.mxu0 0
    %132 = vmatprep.subr.bf16.mxu0 0
    %133 = vmatpush1.bf16.msra.mxu0 0
    %134 = vmatprep.mubr.bf16.mxu0 0
    %135 = vmatmul.mubr.bf16.gmra.mrb[0].mxu0 %v97
    %v136 = vpop.f32.mrb[0].mxu0
    %v137 = vadd.f32 0.0, %v136
    %v138 = vpop.f32.mrb[0].mxu0
    %v139 = vpop.f32.mrb[0].mxu0
    %v140 = vadd.f32 0.0, %v139
    %v141 = vpop.f32.mrb[0].mxu0
    %142 = vmatprep.mubr.bf16.mxu0 0
    %143 = vmatmul.mubr.bf16.gmra.mrb[0].mxu0 %v100
    %v144 = vpop.f32.mrb[0].mxu0
    %v145 = vadd.f32 0.0, %v144
    %v146 = vpop.f32.mrb[0].mxu0
    %v147 = vpop.f32.mrb[0].mxu0
    %v148 = vadd.f32 0.0, %v147
    %v149 = vpop.f32.mrb[0].mxu0
    %150 = vdwg.mxu0
    %v151 = vld [vmem:[%s1] sm:$0x3]
    %v152 = vpack.c.bf16 %v151, %v151
    %v153 = vld [vmem:[#allocation8] sm:$0xf]
    %v154 = vld [vmem:[#allocation8 + $0x4] sm:$0xf]
    %v155 = vld [vmem:[#allocation8 + $0x8] sm:$0xf]
    %v156 = vld [vmem:[#allocation8 + $0xc] sm:$0xf]
    %v157 = vld [vmem:[%s4] sm:$0x1]
    %v159 = vlaneseq
    %v160 = vshrl.u32 %v159, 7
    %v161 = vsub.s32 0, %v160
    %v162 = vrot.slane %v157, %v161
    %v168 = vunpack.c.l.b16 %v153
    %v169 = vunpack.c.l.b16 %v154
    %v170 = vunpack.c.l.b16 %v155
    %v171 = vunpack.c.l.b16 %v156
    %v172 = vpack.c.b16 %v169, %v168
    %v173 = vpack.c.b16 %v171, %v170
    %v177 = vsel %vm95, %v152, 0
    %179 = vmatprep.subr.bf16.mxu0 0
    %180 = vmatpush1.bf16.msra.mxu0 %v172
    %181 = vmatprep.subr.bf16.mxu0 0
    %182 = vmatpush1.bf16.msra.mxu0 %v173
    %183 = vmatprep.subr.bf16.mxu0 0
    %184 = vmatpush1.bf16.msra.mxu0 0
    %185 = vmatprep.subr.bf16.mxu0 0
    %186 = vmatpush1.bf16.msra.mxu0 0
    %187 = vmatprep.subr.bf16.mxu0 0
    %188 = vmatpush1.bf16.msra.mxu0 0
    %189 = vmatprep.subr.bf16.mxu0 0
    %190 = vmatpush1.bf16.msra.mxu0 0
    %191 = vmatprep.subr.bf16.mxu0 0
    %192 = vmatpush1.bf16.msra.mxu0 0
    %193 = vmatprep.subr.bf16.mxu0 0
    %194 = vmatpush1.bf16.msra.mxu0 0
    %195 = vmatprep.subr.bf16.mxu0 0
    %196 = vmatpush1.bf16.msra.mxu0 0
    %197 = vmatprep.subr.bf16.mxu0 0
    %198 = vmatpush1.bf16.msra.mxu0 0
    %199 = vmatprep.subr.bf16.mxu0 0
    %200 = vmatpush1.bf16.msra.mxu0 0
    %201 = vmatprep.subr.bf16.mxu0 0
    %202 = vmatpush1.bf16.msra.mxu0 0
    %203 = vmatprep.subr.bf16.mxu0 0
    %204 = vmatpush1.bf16.msra.mxu0 0
    %205 = vmatprep.subr.bf16.mxu0 0
    %206 = vmatpush1.bf16.msra.mxu0 0
    %207 = vmatprep.subr.bf16.mxu0 0
    %208 = vmatpush1.bf16.msra.mxu0 0
    %209 = vmatprep.subr.bf16.mxu0 0
    %210 = vmatpush1.bf16.msra.mxu0 0
    %211 = vmatprep.mubr.bf16.mxu0 0
    %212 = vmatmul.mubr.bf16.gmra.mrb[0].mxu0 %v177
    %v213 = vpop.f32.mrb[0].mxu0
    %v214 = vadd.f32 %v162, %v213
    %v215 = vpop.f32.mrb[0].mxu0
    %v216 = vpop.f32.mrb[0].mxu0
    %v217 = vpop.f32.mrb[0].mxu0
    %218 = vdwg.mxu0
    %v221 = vunpack.c.l.s4 1966171168
    %v222 = vunpack.c.0.s8 %v221
    %v223 = vlaneseq
    %v224 = vshrl.u32 %v223, 7
    %v225 = vsub.s32 %v222, %v224
    %v226 = vrot.slane %v214, %v225
    %v227 = vcombine.high %v226, %v226
    %v229 = vunpack.c.l.s4 1966171168
    %v230 = vunpack.c.0.s8 %v229
    %v231 = vlaneseq
    %v232 = vshrl.u32 %v231, 7
    %v233 = vsub.s32 %v230, %v232
    %v234 = vrot.slane %v226, %v233
    %v236 = vunpack.c.l.s4 1966171168
    %v237 = vunpack.c.0.s8 %v236
    %v238 = vlaneseq
    %v239 = vshrl.u32 %v238, 7
    %v240 = vsub.s32 %v237, %v239
    %v241 = vrot.slane %v227, %v240
    %v242 = vlaneseq
    %v243 = vshrl.u32 %v242, 7
    %v244 = vsub.s32 0, %v243
    %v245 = vrot.slane %v234, %v244
    %v246 = vlaneseq
    %v247 = vshrl.u32 %v246, 7
    %v248 = vsub.s32 0, %v247
    %v249 = vrot.slane %v241, %v248
    %v252 = vadd.f32 %v137, %v245
    %v253 = vadd.f32 %v140, %v245
    %v254 = vadd.f32 %v145, %v249
    %v255 = vadd.f32 %v148, %v249
    %v256 = vmax.f32 %v252, 0.0
    %v257 = vmax.f32 %v253, 0.0
    %v258 = vmax.f32 %v254, 0.0
    %v259 = vmax.f32 %v255, 0.0
    %v260 = vld [vmem:[%s5] sm:$0x1]
    %v262 = vlaneseq
    %v263 = vshrl.u32 %v262, 7
    %v264 = vsub.s32 0, %v263
    %v265 = vrot.slane %v260, %v264
    %v267 = vmul.f32 %v256, %v265
    %v268 = vmul.f32 %v257, %v265
    %v269 = vmul.f32 %v258, %v265
    %v270 = vmul.f32 %v259, %v265
    %v271 = vsel %vm95, %v267, 0.0
    %272 = vadd.xlane.f32.xlu0 %v271
    %v273 = vpop.xlane.xlu0 %272
    %v274 = vsel %vm95, %v268, 0.0
    %275 = vadd.xlane.f32.xlu0 %v274
    %v276 = vpop.xlane.xlu0 %275
    %v277 = vsel %vm95, %v269, 0.0
    %278 = vadd.xlane.f32.xlu0 %v277
    %v279 = vpop.xlane.xlu0 %278
    %v280 = vsel %vm95, %v270, 0.0
    %281 = vadd.xlane.f32.xlu0 %v280
    %v282 = vpop.xlane.xlu0 %281
    %s283 = sld [smem:[#allocation2]]
    %v284 = vstv %s283
    %v285 = vadd.f32 %v273, %v284
    %v286 = vadd.f32 %v276, %v284
    %v287 = vadd.f32 %v279, %v284
    %v288 = vadd.f32 %v282, %v284
    %v293 = vlaneseq
    %v294 = vand.u32 %v293, 127
    %v295 = vlaneseq
    %v296 = vshrl.u32 %v295, 7
    %v297 = vsub.s32 %v294, %v296
    %v298 = vrot.slane %v285, %v297
    %v299 = vadd.s32 %v294, 4294967288
    %v300 = vlaneseq
    %v301 = vshrl.u32 %v300, 7
    %v302 = vsub.s32 %v299, %v301
    %v303 = vrot.slane %v286, %v302
    %vm304 = vcmask 130112
    %v305 = vsel %vm304, %v303, %v298
    %v306 = vlaneseq
    %v307 = vshrl.u32 %v306, 7
    %v308 = vsub.s32 %v294, %v307
    %v309 = vrot.slane %v287, %v308
    %v310 = vlaneseq
    %v311 = vshrl.u32 %v310, 7
    %v312 = vsub.s32 %v299, %v311
    %v313 = vrot.slane %v288, %v312
    %v314 = vsel %vm304, %v313, %v309
    %vm315 = vcmask 1041409
    %v316 = vsel %vm315, %v314, %v305
    %vm318 = vcmask 123904
    %v319 = vsel %vm318, %v316, -inf
    %320 = vmax.xlane.f32.xlu0 %v319
    %v321 = vpop.xlane.xlu0 %320
    %v323 = vlaneseq
    %v324 = vshrl.u32 %v323, 7
    %v325 = vsub.s32 0, %v324
    %v326 = vrot.slane %v321, %v325
    %v327 = vlaneseq
    %v328 = vshrl.u32 %v327, 7
    %v329 = vsub.s32 1, %v328
    %v330 = vrot.slane %v321, %v329
    %v333 = vsub.f32 %v285, %v326
    %v334 = vsub.f32 %v286, %v326
    %v335 = vsub.f32 %v287, %v330
    %v336 = vsub.f32 %v288, %v330
    %v337 = vmul.f32 %v333, 1.442695
    %v338 = vpow.pop %v337
    %v339 = vmul.f32 %v334, 1.442695
    %v340 = vpow.pop %v339
    %v341 = vmul.f32 %v335, 1.442695
    %v342 = vpow.pop %v341
    %v343 = vmul.f32 %v336, 1.442695
    %v344 = vpow.pop %v343
    %349 = vset.pattern.permute.xlu0 0
    %350 = vperm.xlu0 %349, %v338
    %v351 = vpop.permute.xlu0 %350
    %352 = vset.pattern.permute.xlu0 0
    %353 = vperm.xlu0 %352, %v340
    %v354 = vpop.permute.xlu0 %353
    %355 = vset.pattern.permute.xlu0 0
    %356 = vperm.xlu0 %355, %v342
    %v357 = vpop.permute.xlu0 %356
    %358 = vset.pattern.permute.xlu0 0
    %359 = vperm.xlu0 %358, %v344
    %v360 = vpop.permute.xlu0 %359
    %v361 = vlaneseq
    %v362 = vshrl.u32 %v361, 7
    %v363 = vsub.s32 %v294, %v362
    %v364 = vrot.slane %v351, %v363
    %v365 = vlaneseq
    %v366 = vshrl.u32 %v365, 7
    %v367 = vsub.s32 %v299, %v366
    %v368 = vrot.slane %v354, %v367
    %v369 = vsel %vm304, %v368, %v364
    %v370 = vlaneseq
    %v371 = vshrl.u32 %v370, 7
    %v372 = vsub.s32 %v294, %v371
    %v373 = vrot.slane %v357, %v372
    %v374 = vlaneseq
    %v375 = vshrl.u32 %v374, 7
    %v376 = vsub.s32 %v299, %v375
    %v377 = vrot.slane %v360, %v376
    %v378 = vsel %vm304, %v377, %v373
    %v379 = vsel %vm315, %v378, %v369
    %v381 = vsel %vm318, %v379, 0.0
    %382 = vadd.xlane.f32.xlu0 %v381
    %v383 = vpop.xlane.xlu0 %382
    %v384 = vrcp.pop %v383
    %v386 = vlaneseq
    %v387 = vshrl.u32 %v386, 7
    %v388 = vsub.s32 0, %v387
    %v389 = vrot.slane %v384, %v388
    %v390 = vlaneseq
    %v391 = vshrl.u32 %v390, 7
    %v392 = vsub.s32 1, %v391
    %v393 = vrot.slane %v384, %v392
    %v396 = vmul.f32 %v338, %v389
    %v397 = vmul.f32 %v340, %v389
    %v398 = vmul.f32 %v342, %v393
    %v399 = vmul.f32 %v344, %v393
    %401 = vset.pattern.permute.xlu0 0
    %402 = vperm.xlu0 %401, %v396
    %v403 = vpop.permute.xlu0 %402
    %406 = vset.pattern.permute.xlu0 0
    %407 = vperm.xlu0 %406, %v397
    %v408 = vpop.permute.xlu0 %407
    %411 = vset.pattern.permute.xlu0 0
    %412 = vperm.xlu0 %411, %v398
    %v413 = vpop.permute.xlu0 %412
    %416 = vset.pattern.permute.xlu0 0
    %417 = vperm.xlu0 %416, %v399
    %v418 = vpop.permute.xlu0 %417
    %v420 = vmul.f32 %v73, %v403
    %v421 = vmul.f32 %v74, %v408
    %v422 = vmul.f32 %v75, %v413
    %v423 = vmul.f32 %v76, %v418
    %v424 = vsel %vm95, %v420, 0.0
    %v425 = vsel %vm95, %v421, 0.0
    %v426 = vadd.f32 %v424, %v425
    %v427 = vrot.slane %v426, 4
    %v428 = vadd.f32 %v426, %v427
    %v429 = vrot.slane %v428, 2
    %v430 = vadd.f32 %v428, %v429
    %v431 = vrot.slane %v430, 1
    %v432 = vadd.f32 %v430, %v431
    %v433 = vsel %vm95, %v422, 0.0
    %v434 = vsel %vm95, %v423, 0.0
    %v435 = vadd.f32 %v433, %v434
    %v436 = vrot.slane %v435, 4
    %v437 = vadd.f32 %v435, %v436
    %v438 = vrot.slane %v437, 2
    %v439 = vadd.f32 %v437, %v438
    %v440 = vrot.slane %v439, 1
    %v441 = vadd.f32 %v439, %v440
    %v444 = vsel %vm315, %v441, %v432
    %vm446 = vcmask 254976
    %447 = vst.msk [vmem:[#allocation9] sm:$0x3] %vm446, %v444
    %v448 = vlaneseq
    %v449 = vshrl.u32 %v448, 7
    %v450 = vsub.s32 %v294, %v449
    %v451 = vrot.slane %v403, %v450
    %v452 = vlaneseq
    %v453 = vshrl.u32 %v452, 7
    %v454 = vsub.s32 %v299, %v453
    %v455 = vrot.slane %v408, %v454
    %v456 = vsel %vm304, %v455, %v451
    %v457 = vlaneseq
    %v458 = vshrl.u32 %v457, 7
    %v459 = vsub.s32 %v294, %v458
    %v460 = vrot.slane %v413, %v459
    %v461 = vlaneseq
    %v462 = vshrl.u32 %v461, 7
    %v463 = vsub.s32 %v299, %v462
    %v464 = vrot.slane %v418, %v463
    %v465 = vsel %vm304, %v464, %v460
    %v466 = vsel %vm315, %v465, %v456
    %vm468 = vcmask 130048
    %v469 = vsel %vm468, %v466, 0.0
    %470 = vst [vmem:[#allocation10] sm:$0x3] %v469
    // Predicated region
    $region42: #{tpu_custom_call.1} parent=1 // pred_check
      _
    $region43: #{tpu_custom_call.1} parent=1 // pred_check_branch
      %472 = sbr.rel (0) target = $region45
    $region44: #{tpu_custom_call.1} parent=1 // pred_region
      %s474 = ssub.s32 32, 32
      %475 = vsyncadd [#allocation5], %s474
      %s477 = sshll.u32 [#allocation9], 4
      %s478 = int_to_ptr.vmem [resolvable:$true] %s477
      %480 = dma.vmem_to_hbm [thread:$0]  %s478, 32, %s7, [#allocation5]
    $region45: #{tpu_custom_call.1} parent=1 // pred_fallthru
      _
    // Predicated region
    $region46: #{tpu_custom_call.1} parent=1 // pred_check
      _
    $region47: #{tpu_custom_call.1} parent=1 // pred_check_branch
      %482 = sbr.rel (0) target = $region49
    $region48: #{tpu_custom_call.1} parent=1 // pred_region
      %s484 = ssub.s32 32, 32
      %485 = vsyncadd [#allocation11], %s484
      %s487 = sshll.u32 [#allocation10], 4
      %s488 = int_to_ptr.vmem [resolvable:$true] %s487
      %490 = dma.vmem_to_hbm [thread:$0]  %s488, 32, %s8, [#allocation11]
    $region49: #{tpu_custom_call.1} parent=1 // pred_fallthru
      _
    // Predicated region
    $region50: #{tpu_custom_call.1} parent=1 // pred_check
      _
    $region51: #{tpu_custom_call.1} parent=1 // pred_check_branch
      %492 = sbr.rel (0) target = $region53
    $region52: #{tpu_custom_call.1} parent=1 // pred_region
      %493 = dma.done [#allocation5], 32
    $region53: #{tpu_custom_call.1} parent=1 // pred_fallthru
      _
    // Predicated region
    $region54: #{tpu_custom_call.1} parent=1 // pred_check
      _
    $region55: #{tpu_custom_call.1} parent=1 // pred_check_branch
      %495 = sbr.rel (0) target = $region57
    $region56: #{tpu_custom_call.1} parent=1 // pred_region
      %496 = dma.done [#allocation11], 32
    $region57: #{tpu_custom_call.1} parent=1 // pred_fallthru
      _
    %497 = vsyncpa [#allocation4], 1
    %498 = vsyncpa [#allocation7], 1
    %499 = vsyncpa [#allocation5], 1
    %500 = vsyncpa [#allocation11], 1

</llo_original>
